<compile_context>
chip_gen: v7x
topology: tpu7x:2x2x1
jax: 0.10.0
libtpu: 0.0.40
codegen_flags: <defaults>
</compile_context>

<pallas_src>
import functools

import jax
import jax.numpy as jnp
from jax import lax
from jax.experimental import pallas as pl
from jax.experimental.pallas import tpu as pltpu


def _round_up(n: int, m: int) -> int:
    return ((n + m - 1) // m) * m


# ----------------------------- Pallas kernel ------------------------------ #
def _head_kernel(x_ref, wt_ref, b_ref, o_ref):
    # x_ref : (tm, F)   bf16  -- streamed tile of fused features (rows of M)
    # wt_ref: (N8, F)   bf16  -- resident transposed weights (padded to 8 rows)
    # b_ref : (N8, 1)   f32   -- resident bias column
    # o_ref : (N8, tm)  f32   -- transposed output tile (M on lanes)
    acc = lax.dot_general(
        wt_ref[...], x_ref[...],
        dimension_numbers=(((1,), (1,)), ((), ())),   # contract over F
        preferred_element_type=jnp.float32,
    )                                                 # (N8, tm) f32 on MXU
    o_ref[...] = acc + b_ref[...]                     # f32 bias add on VPU


@functools.partial(jax.jit, static_argnames=("output_size", "tm"))
def linear_head_pallas(x, w, b, *, output_size: int, tm: int = 512):
    """x: [M, F] f32, w: [F, output_size] f32, b: [output_size] f32 -> [M, output_size] f32."""
    M, F = x.shape
    N8 = _round_up(output_size, 8)                    # sublane-pad outputs only to 8

    # Row tile: 512 rows for large M, otherwise a single 8-aligned tile.
    tm_eff = tm if M >= tm else _round_up(M, 8)
    Mp = _round_up(M, tm_eff)
    grid_m = Mp // tm_eff

    # bf16 streamed input / weights; f32 accumulate + bias.
    x_bf = x.astype(jnp.bfloat16)
    wt = (jnp.zeros((N8, F), jnp.bfloat16)
          .at[:output_size, :].set(w.T.astype(jnp.bfloat16)))
    b_col = jnp.zeros((N8, 1), jnp.float32).at[:output_size, 0].set(b)

    # Explicit scoped-VMEM budget: double-buffered tiles + headroom.
    tile_bytes = (2 * tm_eff * F * 2      # x (bf16, 2 buffers)
                  + 2 * N8 * F * 2        # wt (bf16, resident, 2 buffers)
                  + 2 * N8 * 1 * 4        # bias
                  + 2 * N8 * tm_eff * 4)  # output (f32, 2 buffers)
    vmem_limit = max(4 * tile_bytes + (1 << 20), 16 * 1024 * 1024)

    out_t = pl.pallas_call(
        _head_kernel,
        out_shape=jax.ShapeDtypeStruct((N8, Mp), jnp.float32),
        grid=(grid_m,),
        in_specs=[
            pl.BlockSpec((tm_eff, F), lambda i: (i, 0)),   # streamed over M
            pl.BlockSpec((N8, F), lambda i: (0, 0)),       # resident weights
            pl.BlockSpec((N8, 1), lambda i: (0, 0)),       # resident bias
        ],
        out_specs=pl.BlockSpec((N8, tm_eff), lambda i: (0, i)),  # M on lanes
        compiler_params=pltpu.CompilerParams(
            dimension_semantics=("parallel",),             # megacore on v7x
            vmem_limit_bytes=int(vmem_limit),
        ),
    )(x_bf, wt, b_col)

    # Slice real outputs / rows; tiny [N8, M] transpose handled by XLA.
    return out_t[:output_size, :M].T


# ------------------------------ Model wrapper ------------------------------ #
class BaseModelPallas:
    """JAX/Pallas analogue of BaseModel with a linear regression head."""

    def __init__(self, cfg: dict):
        self.cfg = cfg
        self.output_size = len(cfg["target_variable"])
        self.head = cfg.get("head", "regression")

    def init_params(self, key, d_dyn: int, d_stat: int, d_onehot: int):
        f = d_dyn + d_stat + d_onehot
        kw, _ = jax.random.split(key)
        w = (jax.random.normal(kw, (f, self.output_size), jnp.float32)
             / jnp.sqrt(jnp.float32(f)))
        b = jnp.zeros((self.output_size,), jnp.float32)
        return {"w": w, "b": b}

    def forward(self, params, x_d, x_s, x_one_hot):
        # x_d: [B, T, D_d], x_s: [B, D_s], x_one_hot: [B, D_oh]   (all f32)
        B, T, _ = x_d.shape
        x_s_t = jnp.broadcast_to(x_s[:, None, :], (B, T, x_s.shape[-1]))
        x_oh_t = jnp.broadcast_to(x_one_hot[:, None, :], (B, T, x_one_hot.shape[-1]))
        feats = jnp.concatenate([x_d, x_s_t, x_oh_t], axis=-1)        # [B, T, F]
        F = feats.shape[-1]

        flat = feats.reshape(B * T, F)                                # [M, F]
        y_flat = linear_head_pallas(flat, params["w"], params["b"],
                                    output_size=self.output_size)     # [M, out]
        y_hat = y_flat.reshape(B, T, self.output_size)                # per-step preds
        y_last = y_hat[:, -1, :]                                      # last-step preds
        return y_hat, y_last, feats


# --------------------------------- Driver ---------------------------------- #
if __name__ == "__main__":
    cfg = {"target_variable": ["discharge", "evap"], "head": "regression"}
    model = BaseModelPallas(cfg)

    B, T = 2, 8
    D_d, D_s, D_oh = 16, 8, 4

    key = jax.random.PRNGKey(0)
    k_d, k_s, k_oh, k_p = jax.random.split(key, 4)
    x_d = jax.random.normal(k_d, (B, T, D_d), jnp.float32)
    x_s = jax.random.normal(k_s, (B, D_s), jnp.float32)
    x_one_hot = jax.nn.one_hot(
        jax.random.randint(k_oh, (B,), 0, D_oh), D_oh, dtype=jnp.float32
    )

    params = model.init_params(k_p, D_d, D_s, D_oh)

    y_hat, y_last, feats = model.forward(params, x_d, x_s, x_one_hot)
    jax.block_until_ready((y_hat, y_last, feats))

    # Sanity check against a plain-JAX reference on the same bf16-rounded inputs
    # (kernel uses bf16 inputs with f32 accumulation).
    flat_bf = feats.reshape(B * T, -1).astype(jnp.bfloat16).astype(jnp.float32)
    w_bf = params["w"].astype(jnp.bfloat16).astype(jnp.float32)
    ref = (flat_bf @ w_bf + params["b"]).reshape(B, T, model.output_size)

    assert y_hat.shape == (B, T, model.output_size)
    assert y_last.shape == (B, model.output_size)
    assert jnp.allclose(y_hat, ref, atol=1e-2, rtol=1e-2)
    assert jnp.allclose(y_last, ref[:, -1, :], atol=1e-2, rtol=1e-2)

    print("KERNEL_OK")
</pallas_src>

<mosaic_0001>
module attributes {stable_mosaic.version = 11 : i64} {
  func.func @_head_kernel(%arg0: i32, %arg1: memref<16x28xbf16, #tpu.memory_space<vmem>>, %arg2: memref<8x28xbf16, #tpu.memory_space<vmem>>, %arg3: memref<8x1xf32, #tpu.memory_space<vmem>>, %arg4: memref<8x16xf32, #tpu.memory_space<vmem>>) attributes {dimension_semantics = [#tpu.dimension_semantics<parallel>], iteration_bounds = array<i64: 1>, scalar_prefetch = 0 : i64, scratch_operands = 0 : i64, tpu.core_type = #tpu.core_type<tc>, window_params = [{transform_indices = @transform_0, window_bounds = array<i64: 16, 28>}, {pipeline_mode = #tpu.pipeline_mode<synchronous>, transform_indices = @transform_1, window_bounds = array<i64: 8, 28>}, {pipeline_mode = #tpu.pipeline_mode<synchronous>, transform_indices = @transform_2, window_bounds = array<i64: 8, 1>}, {transform_indices = @transform_3, window_bounds = array<i64: 8, 16>}]} {
    %c0 = arith.constant 0 : index
    %c0_0 = arith.constant 0 : index
    %0 = vector.load %arg2[%c0, %c0_0] : memref<8x28xbf16, #tpu.memory_space<vmem>>, vector<8x28xbf16>
    %c0_1 = arith.constant 0 : index
    %c0_2 = arith.constant 0 : index
    %1 = vector.load %arg1[%c0_1, %c0_2] : memref<16x28xbf16, #tpu.memory_space<vmem>>, vector<16x28xbf16>
    %cst = arith.constant dense<0.000000e+00> : vector<8x16xf32>
    %2 = tpu.matmul %0, %1, %cst {dimension_numbers = #tpu.dot_dimension_numbers<[1], [1], [0], [0], [0, 0, 1, 0], [], []>} : vector<8x28xbf16>, vector<16x28xbf16>, vector<8x16xf32> -> vector<8x16xf32>
    %c0_3 = arith.constant 0 : index
    %c0_4 = arith.constant 0 : index
    %3 = vector.load %arg3[%c0_3, %c0_4] : memref<8x1xf32, #tpu.memory_space<vmem>>, vector<8x1xf32>
    %4 = vector.broadcast %3 : vector<8x1xf32> to vector<8x16xf32>
    %5 = arith.addf %2, %4 : vector<8x16xf32>
    %c0_5 = arith.constant 0 : index
    %c0_6 = arith.constant 0 : index
    %6 = vector.load %arg4[%c0_5, %c0_6] : memref<8x16xf32, #tpu.memory_space<vmem>>, vector<8x16xf32>
    tpu.vector_store %arg4[%c0_5, %c0_6], %5 {strides = array<i32>} : memref<8x16xf32, #tpu.memory_space<vmem>>, vector<8x16xf32>,
    return
  }
  func.func @transform_0(%arg0: i32) -> (i32, i32) {
    %c0_i32 = arith.constant 0 : i32
    %c0_i32_0 = arith.constant 0 : i32
    return %arg0, %c0_i32 : i32, i32
  }
  func.func @transform_1(%arg0: i32) -> (i32, i32) {
    %c0_i32 = arith.constant 0 : i32
    %c0_i32_0 = arith.constant 0 : i32
    %c0_i32_1 = arith.constant 0 : i32
    return %c0_i32, %c0_i32_0 : i32, i32
  }
  func.func @transform_2(%arg0: i32) -> (i32, i32) {
    %c0_i32 = arith.constant 0 : i32
    %c0_i32_0 = arith.constant 0 : i32
    %c0_i32_1 = arith.constant 0 : i32
    return %c0_i32, %c0_i32_0 : i32, i32
  }
  func.func @transform_3(%arg0: i32) -> (i32, i32) {
    %c0_i32 = arith.constant 0 : i32
    %c0_i32_0 = arith.constant 0 : i32
    return %c0_i32, %arg0 : i32, i32
  }
}

</mosaic_0001>

<llo_original>
// kernel: linear_head_pallas.1
$region0: #{linear_head_pallas.1}
  #allocation0 [shape = 'u32[]', space=smem, size = 0x4, offset = 0x4, fixed_abs, tag = 'smem constant byte address 0x4 - core index']
  #allocation1 [shape = 'u32[144,128]{1,0:T(1,128)}', space=vmem, size = 0x12000, scoped, tag = 'internal scratch']
  %s0 = inlined_call_operand.vmem [shape: bf16[16,28], index: 0, kind: input, shape index: {}]
  %s1 = inlined_call_operand.vmem [shape: bf16[8,28], index: 1, kind: input, shape index: {}]
  %s2 = inlined_call_operand.vmem [shape: f32[8,1], index: 2, kind: input, shape index: {}]
  %s3 = inlined_call_operand.vmem [shape: f32[8,16], index: 3, kind: output, shape index: {}]
  %s4 = sld [smem:[#allocation0]]
  $region22: #{linear_head_pallas.1} parent=0
    _
  %s6 = ssub.s32 1, %s4
  %s7 = scalar_select 0, %s6, %s4
  // Predicated region
  $region2: #{linear_head_pallas.1} parent=0 // pred_check
    _
  $region3: #{linear_head_pallas.1} parent=0 // pred_check_branch
    %9 = sbr.rel (0) target = $region5
  $region4: #{linear_head_pallas.1} parent=0 // pred_region
    _
  $region5: #{linear_head_pallas.1} parent=0 // pred_fallthru
    _
  // Predicated region
  $region6: #{linear_head_pallas.1} parent=0 // pred_check
    _
  $region7: #{linear_head_pallas.1} parent=0 // pred_check_branch
    %11 = sbr.rel (0) target = $region9
  $region8: #{linear_head_pallas.1} parent=0 // pred_region
    _
  $region9: #{linear_head_pallas.1} parent=0 // pred_fallthru
    _
  // Predicated region
  $region10: #{linear_head_pallas.1} parent=0 // pred_check
    _
  $region11: #{linear_head_pallas.1} parent=0 // pred_check_branch
    %13 = sbr.rel (0) target = $region13
  $region12: #{linear_head_pallas.1} parent=0 // pred_region
    _
  $region13: #{linear_head_pallas.1} parent=0 // pred_fallthru
    _
  %v15 = vld [vmem:[%s1] sm:$0xf]
  %v16 = vld [vmem:[%s0] sm:$0xf]
  %v17 = vld [vmem:[%s0 + $0x4] sm:$0xf]
  %v18 = vld [vmem:[%s2] sm:$0xff]
  %20 = vset.pattern.permute.xlu0 0
  %21 = vperm.xlu0 %20, %v18
  %v22 = vpop.permute.xlu0 %21
  %v26 = vunpack.c.l.b16 %v16
  %v27 = vunpack.c.l.b16 %v17
  %v28 = vpack.c.b16 %v27, %v26
  %vm29 = vcmask 228352
  %v31 = vsel %vm29, %v15, 0
  %v34 = vsel %vm29, %v28, 0
  %36 = vmatprep.subr.bf16.mxu0 0
  %37 = vmatpush1.bf16.xpose.msra.mxu0 %v34
  %38 = vmatprep.subr.bf16.mxu0 0
  %39 = vmatpush1.bf16.xpose.msra.mxu0 0
  %40 = vmatprep.subr.bf16.mxu0 0
  %41 = vmatpush1.bf16.xpose.msra.mxu0 0
  %42 = vmatprep.subr.bf16.mxu0 0
  %43 = vmatpush1.bf16.xpose.msra.mxu0 0
  %44 = vmatprep.subr.bf16.mxu0 0
  %45 = vmatpush1.bf16.xpose.msra.mxu0 0
  %46 = vmatprep.subr.bf16.mxu0 0
  %47 = vmatpush1.bf16.xpose.msra.mxu0 0
  %48 = vmatprep.subr.bf16.mxu0 0
  %49 = vmatpush1.bf16.xpose.msra.mxu0 0
  %50 = vmatprep.subr.bf16.mxu0 0
  %51 = vmatpush1.bf16.xpose.msra.mxu0 0
  %52 = vmatprep.subr.bf16.mxu0 0
  %53 = vmatpush1.bf16.xpose.msra.mxu0 0
  %54 = vmatprep.subr.bf16.mxu0 0
  %55 = vmatpush1.bf16.xpose.msra.mxu0 0
  %56 = vmatprep.subr.bf16.mxu0 0
  %57 = vmatpush1.bf16.xpose.msra.mxu0 0
  %58 = vmatprep.subr.bf16.mxu0 0
  %59 = vmatpush1.bf16.xpose.msra.mxu0 0
  %60 = vmatprep.subr.bf16.mxu0 0
  %61 = vmatpush1.bf16.xpose.msra.mxu0 0
  %62 = vmatprep.subr.bf16.mxu0 0
  %63 = vmatpush1.bf16.xpose.msra.mxu0 0
  %64 = vmatprep.subr.bf16.mxu0 0
  %65 = vmatpush1.bf16.xpose.msra.mxu0 0
  %66 = vmatprep.subr.bf16.mxu0 0
  %67 = vmatpush1.bf16.xpose.msra.mxu0 0
  %68 = vmatprep.mubr.bf16.mxu0 0
  %69 = vmatmul.mubr.bf16.gmra.mrb[0].mxu0 %v31
  %v70 = vpop.f32.mrb[0].mxu0
  %v71 = vadd.f32 %v22, %v70
  %v72 = vpop.f32.mrb[0].mxu0
  %v73 = vpop.f32.mrb[0].mxu0
  %v74 = vpop.f32.mrb[0].mxu0
  %75 = vdwg.mxu0
  %vm76 = vcmask 130048
  %77 = vst.msk [vmem:[%s3] sm:$0xff] %vm76, %v71
  // Predicated region
  $region14: #{linear_head_pallas.1} parent=0 // pred_check
    _
  $region15: #{linear_head_pallas.1} parent=0 // pred_check_branch
    %79 = sbr.rel (0) target = $region17
  $region16: #{linear_head_pallas.1} parent=0 // pred_region
    _
  $region17: #{linear_head_pallas.1} parent=0 // pred_fallthru
    _
  // Predicated region
  $region18: #{linear_head_pallas.1} parent=0 // pred_check
    _
  $region19: #{linear_head_pallas.1} parent=0 // pred_check_branch
    %81 = sbr.rel (0) target = $region21
  $region20: #{linear_head_pallas.1} parent=0 // pred_region
    _
  $region21: #{linear_head_pallas.1} parent=0 // pred_fallthru
    _

</llo_original>
